<compile_context>
chip_gen: v7x
topology: tpu7x:2x2x1
jax: 0.10.0
libtpu: 0.0.40
codegen_flags: <defaults>
</compile_context>

<pallas_src>
import functools

import jax
import jax.numpy as jnp
from jax import lax
from jax.experimental import pallas as pl
from jax.experimental.pallas import tpu as pltpu

LANES = 128
SUBLANES = 8
CHUNK_ROWS = 128                 # rows per inner compute chunk (16 f32 vregs/operand)
ROW_TILE = 8192                  # rows per DMA block (f32: 4 MiB per input per buffer)
VMEM_LIMIT_BYTES = 28 * 1024 * 1024


def _round_up(x, m):
    return ((x + m - 1) // m) * m


def _sq_diff_kernel(o_ref, t_ref, out_ref, acc_ref, *, row_tile, chunk,
                    rows_valid, steps_per_shard, may_need_mask):
    """Per-shard partial sum of (o - t)^2 over a (rows, 128) slab.

    grid = (num_shards, steps); axis 0 'parallel' (megacore), axis 1 the
    sequential reduction over row tiles.  acc_ref is an (8,128) f32 VMEM
    vector accumulator; hot path is VPU-only, the single cross-lane reduce
    runs once in the epilogue.
    """
    si = pl.program_id(0)
    ki = pl.program_id(1)

    @pl.when(ki == 0)
    def _():
        acc_ref[...] = jnp.zeros_like(acc_ref)

    g = si * steps_per_shard + ki          # unclamped global tile index
    row_start = g * row_tile
    n_chunks = row_tile // chunk

    def accumulate(masked):
        # Chunked accumulation: recompute d^2 per 128-row chunk and fold into
        # acc_ref, so no full (row_tile,128) dsq temp ever materializes in VMEM.
        @pl.loop(0, n_chunks)
        def _(c):
            off = pl.multiple_of(c * chunk, chunk)
            o = o_ref[pl.ds(off, chunk), :].astype(jnp.float32)
            t = t_ref[pl.ds(off, chunk), :].astype(jnp.float32)
            d = o - t
            dsq = d * d
            if masked:
                rid = (row_start + off
                       + lax.broadcasted_iota(jnp.int32, (chunk, LANES), 0))
                # Select AFTER the square: undefined boundary-block data
                # (possibly Inf/NaN) must not leak through 0*Inf.
                dsq = jnp.where(rid < rows_valid, dsq, 0.0)
            acc_ref[...] += dsq.reshape(chunk // SUBLANES, SUBLANES, LANES).sum(axis=0)

    if may_need_mask:
        tile_fully_valid = (row_start + row_tile) <= rows_valid

        @pl.when(tile_fully_valid)
        def _():
            accumulate(False)

        @pl.when(jnp.logical_not(tile_fully_valid))
        def _():
            accumulate(True)
    else:
        accumulate(False)

    @pl.when(ki == pl.num_programs(1) - 1)
    def _():
        out_ref[0, 0] = jnp.sum(acc_ref[...])


def _pallas_sq_diff_sum(output_2d, target_2d, *, row_tile=None):
    """Sum of squared differences over a lane-dense (rows, 128) slab."""
    rows = output_2d.shape[0]
    if rows == 0:
        return jnp.float32(0.0)

    if row_tile is None:
        row_tile = min(ROW_TILE, _round_up(rows, CHUNK_ROWS))
    chunk = min(CHUNK_ROWS, row_tile)
    assert row_tile % chunk == 0 and chunk % SUBLANES == 0

    num_tiles = pl.cdiv(rows, row_tile)
    # Always split the tile range across 2 TensorCores when possible (v7x):
    # ceiling split; the short shard's phantom step is masked in-kernel.
    num_shards = 2 if num_tiles >= 2 else 1
    steps = pl.cdiv(num_tiles, num_shards)
    may_need_mask = (rows % row_tile != 0) or (num_shards * steps != num_tiles)

    kernel = functools.partial(
        _sq_diff_kernel, row_tile=row_tile, chunk=chunk, rows_valid=rows,
        steps_per_shard=steps, may_need_mask=may_need_mask)

    def in_map(si, ki):
        # Clamp the phantom step of the short shard onto the last real tile;
        # its contribution is masked to zero in-kernel.
        return (jnp.minimum(si * steps + ki, num_tiles - 1), 0)

    partials = pl.pallas_call(
        kernel,
        out_shape=jax.ShapeDtypeStruct((num_shards, 1), jnp.float32),
        grid_spec=pltpu.PrefetchScalarGridSpec(
            num_scalar_prefetch=0,
            grid=(num_shards, steps),
            in_specs=[
                pl.BlockSpec((row_tile, LANES), in_map),
                pl.BlockSpec((row_tile, LANES), in_map),
            ],
            out_specs=pl.BlockSpec((1, 1), lambda si, ki: (si, 0),
                                   memory_space=pltpu.SMEM),
            scratch_shapes=[pltpu.VMEM((SUBLANES, LANES), jnp.float32)],
        ),
        compiler_params=pltpu.CompilerParams(
            dimension_semantics=("parallel", "arbitrary"),
            vmem_limit_bytes=VMEM_LIMIT_BYTES,
        ),
    )(output_2d, target_2d)
    return jnp.sum(partials)


class BaseLoss:
    """JAX/Pallas port of the PyTorch BaseLoss with loss_fn := weighted MSE."""

    def __init__(self, output_key, target_key, nickname=None, weight=1):
        self.output_key = output_key
        self.target_key = target_key
        self.weight = weight
        self.nickname = self.__class__.__name__ if nickname is None else nickname

    def _preproces(self, data_dict, output_dict):
        return (data_dict, output_dict)

    def _postprocess(self, output, target):
        return (output, target)

    def loss_fn(self, output, target):
        n_true = output.size
        o = output.reshape(-1)
        t = target.reshape(-1)
        main_n = (n_true // LANES) * LANES

        total = jnp.float32(0.0)
        if main_n:
            total = total + _pallas_sq_diff_sum(
                o[:main_n].reshape(-1, LANES),
                t[:main_n].reshape(-1, LANES))
        if n_true - main_n:
            # <128-element tail: tiny wrapper-side op, no full-tensor pad copy.
            od = o[main_n:].astype(jnp.float32)
            td = t[main_n:].astype(jnp.float32)
            total = total + jnp.sum((od - td) ** 2)

        # Single scalar scale; works for Python-scalar or traced weights.
        scale = jnp.asarray(self.weight, jnp.float32) / jnp.float32(n_true)
        return total * scale

    def forward(self, data_dict, output_dict):
        data_dict, output_dict = self._preproces(data_dict, output_dict)
        output = output_dict[self.output_key]
        target = data_dict[self.target_key]
        output, target = self._postprocess(output, target)
        return self.loss_fn(output, target)

    __call__ = forward


if __name__ == "__main__":
    key = jax.random.PRNGKey(0)
    k1, k2, k3, k4, k5, k6, k7, k8 = jax.random.split(key, 8)

    loss_mod = BaseLoss(output_key="pred", target_key="gt", weight=1)

    # 1) Small NCHW, lane-aligned element count (2*4*16*16 = 2048).
    pred = jax.random.normal(k1, (2, 4, 16, 16), dtype=jnp.float32)
    tgt = jax.random.normal(k2, (2, 4, 16, 16), dtype=jnp.float32)
    loss = jax.block_until_ready(loss_mod({"gt": tgt}, {"pred": pred}))
    ref = jnp.mean((pred - tgt) ** 2)
    assert jnp.allclose(loss, ref, rtol=1e-5, atol=1e-5), (loss, ref)

    # 1b) Non-unit weight.
    loss_mod_w = BaseLoss(output_key="pred", target_key="gt", weight=0.5)
    loss_w = jax.block_until_ready(loss_mod_w({"gt": tgt}, {"pred": pred}))
    assert jnp.allclose(loss_w, 0.5 * ref, rtol=1e-5, atol=1e-5), (loss_w, ref)

    # 2) Ragged element count (5*4*5*10 = 1000, not a multiple of 128):
    #    exercises the unpadded-main + wrapper-tail path.
    pred2 = jax.random.normal(k3, (5, 4, 5, 10), dtype=jnp.float32)
    tgt2 = jax.random.normal(k4, (5, 4, 5, 10), dtype=jnp.float32)
    loss2 = jax.block_until_ready(loss_mod({"gt": tgt2}, {"pred": pred2}))
    ref2 = jnp.mean((pred2 - tgt2) ** 2)
    assert jnp.allclose(loss2, ref2, rtol=1e-5, atol=1e-5), (loss2, ref2)

    # 3) bf16 case (8*8*64*128 = 524288 elems -> 4096 rows): exercises
    #    native-bf16 streaming and the chunked unmasked hot path.
    pred3 = jax.random.normal(k5, (8, 8, 64, 128), dtype=jnp.bfloat16)
    tgt3 = jax.random.normal(k6, (8, 8, 64, 128), dtype=jnp.bfloat16)
    loss3 = jax.block_until_ready(loss_mod({"gt": tgt3}, {"pred": pred3}))
    ref3 = jnp.mean((pred3.astype(jnp.float32) - tgt3.astype(jnp.float32)) ** 2)
    assert jnp.allclose(loss3, ref3, rtol=1e-3, atol=1e-3), (loss3, ref3)

    # 4) Odd tile count (rows=300, forced row_tile=128 -> 3 tiles): 2-shard
    #    ceiling split with a boundary block and a masked phantom step.
    pred4 = jax.random.normal(k7, (2, 4, 48, 100), dtype=jnp.float32)  # 38400 elems
    tgt4 = jax.random.normal(k8, (2, 4, 48, 100), dtype=jnp.float32)
    o4 = pred4.reshape(-1, LANES)
    t4 = tgt4.reshape(-1, LANES)
    ssum = jax.block_until_ready(_pallas_sq_diff_sum(o4, t4, row_tile=128))
    ref4 = jnp.sum((pred4 - tgt4) ** 2)
    assert jnp.allclose(ssum, ref4, rtol=1e-4, atol=1e-2), (ssum, ref4)

    print("KERNEL_OK")
</pallas_src>

<mosaic_0001>
module attributes {stable_mosaic.version = 11 : i64} {
  func.func @_sq_diff_kernel(%arg0: i32, %arg1: i32, %arg2: memref<128x128xf32, #tpu.memory_space<vmem>>, %arg3: memref<128x128xf32, #tpu.memory_space<vmem>>, %arg4: memref<1x1xf32, #tpu.memory_space<smem>>, %arg5: memref<8x128xf32, #tpu.memory_space<vmem>>) attributes {dimension_semantics = [#tpu.dimension_semantics<parallel>, #tpu.dimension_semantics<arbitrary>], iteration_bounds = array<i64: 1, 1>, scalar_prefetch = 0 : i64, scratch_operands = 1 : i64, tpu.core_type = #tpu.core_type<tc>, window_params = [{transform_indices = @transform_0, window_bounds = array<i64: 128, 128>}, {transform_indices = @transform_1, window_bounds = array<i64: 128, 128>}, {transform_indices = @transform_2, window_bounds = array<i64: 1, 1>}]} {
    %c0_i32 = arith.constant 0 : i32
    %0 = arith.cmpi eq, %arg1, %c0_i32 : i32
    %1 = arith.extui %0 : i1 to i32
    %c0_i32_0 = arith.constant 0 : i32
    %2 = arith.cmpi ne, %1, %c0_i32_0 : i32
    scf.if %2 {
      %cst = arith.constant 0.000000e+00 : f32
      %16 = vector.broadcast %cst : f32 to vector<8x128xf32>
      %c0 = arith.constant 0 : index
      %c0_6 = arith.constant 0 : index
      %17 = vector.load %arg5[%c0, %c0_6] : memref<8x128xf32, #tpu.memory_space<vmem>>, vector<8x128xf32>
      tpu.vector_store %arg5[%c0, %c0_6], %16 {strides = array<i32>} : memref<8x128xf32, #tpu.memory_space<vmem>>, vector<8x128xf32>,
    } else {
    }
    %c1_i32 = arith.constant 1 : i32
    %3 = arith.muli %arg0, %c1_i32 : i32
    %4 = arith.addi %3, %arg1 : i32
    %c128_i32 = arith.constant 128 : i32
    %5 = arith.muli %4, %c128_i32 : i32
    %c128_i32_1 = arith.constant 128 : i32
    %6 = arith.addi %5, %c128_i32_1 : i32
    %c16_i32 = arith.constant 16 : i32
    %7 = arith.cmpi sle, %6, %c16_i32 : i32
    %8 = arith.extui %7 : i1 to i32
    %c0_i32_2 = arith.constant 0 : i32
    %9 = arith.cmpi ne, %8, %c0_i32_2 : i32
    scf.if %9 {
      %c0_i32_6 = arith.constant 0 : i32
      %c1_i32_7 = arith.constant 1 : i32
      %16 = arith.muli %c0_i32_6, %c1_i32_7 : i32
      %c0_i32_8 = arith.constant 0 : i32
      %17 = arith.addi %c0_i32_8, %16 : i32
      %c128_i32_9 = arith.constant 128 : i32
      %18 = arith.muli %17, %c128_i32_9 : i32
      %19 = tpu.assume_multiple %18, 128 : i32
      %20 = arith.index_cast %19 : i32 to index
      %c0 = arith.constant 0 : index
      %21 = vector.load %arg2[%20, %c0] : memref<128x128xf32, #tpu.memory_space<vmem>>, vector<128x128xf32>
      %22 = arith.index_cast %19 : i32 to index
      %c0_10 = arith.constant 0 : index
      %23 = vector.load %arg3[%22, %c0_10] : memref<128x128xf32, #tpu.memory_space<vmem>>, vector<128x128xf32>
      %24 = arith.subf %21, %23 : vector<128x128xf32>
      %25 = arith.mulf %24, %24 : vector<128x128xf32>
      %c0_11 = arith.constant 0 : index
      %c0_12 = arith.constant 0 : index
      %26 = vector.load %arg5[%c0_11, %c0_12] : memref<8x128xf32, #tpu.memory_space<vmem>>, vector<8x128xf32>
      %27 = vector.shape_cast %25 : vector<128x128xf32> to vector<16x8x128xf32>
      %cst = arith.constant dense<0.000000e+00> : vector<8x128xf32>
      %28 = vector.multi_reduction <add>, %27, %cst [0] : vector<16x8x128xf32> to vector<8x128xf32>
      %29 = arith.addf %26, %28 : vector<8x128xf32>
      %c0_13 = arith.constant 0 : index
      %c0_14 = arith.constant 0 : index
      %30 = vector.load %arg5[%c0_13, %c0_14] : memref<8x128xf32, #tpu.memory_space<vmem>>, vector<8x128xf32>
      tpu.vector_store %arg5[%c0_13, %c0_14], %29 {strides = array<i32>} : memref<8x128xf32, #tpu.memory_space<vmem>>, vector<8x128xf32>,
      %c1_i32_15 = arith.constant 1 : i32
    } else {
    }
    %true = arith.constant true
    %10 = arith.xori %7, %true : i1
    %11 = arith.extui %10 : i1 to i32
    %c0_i32_3 = arith.constant 0 : i32
    %12 = arith.cmpi ne, %11, %c0_i32_3 : i32
    scf.if %12 {
      %c0_i32_6 = arith.constant 0 : i32
      %c1_i32_7 = arith.constant 1 : i32
      %16 = arith.muli %c0_i32_6, %c1_i32_7 : i32
      %c0_i32_8 = arith.constant 0 : i32
      %17 = arith.addi %c0_i32_8, %16 : i32
      %c128_i32_9 = arith.constant 128 : i32
      %18 = arith.muli %17, %c128_i32_9 : i32
      %19 = tpu.assume_multiple %18, 128 : i32
      %20 = arith.index_cast %19 : i32 to index
      %c0 = arith.constant 0 : index
      %21 = vector.load %arg2[%20, %c0] : memref<128x128xf32, #tpu.memory_space<vmem>>, vector<128x128xf32>
      %22 = arith.index_cast %19 : i32 to index
      %c0_10 = arith.constant 0 : index
      %23 = vector.load %arg3[%22, %c0_10] : memref<128x128xf32, #tpu.memory_space<vmem>>, vector<128x128xf32>
      %24 = arith.subf %21, %23 : vector<128x128xf32>
      %25 = arith.mulf %24, %24 : vector<128x128xf32>
      %26 = arith.addi %5, %19 : i32
      %27 = tpu.iota {dimensions = array<i32: 0>} : vector<128x128xi32>
      %28 = vector.broadcast %26 : i32 to vector<128x128xi32>
      %29 = arith.addi %28, %27 : vector<128x128xi32>
      %c16_i32_11 = arith.constant 16 : i32
      %30 = vector.broadcast %c16_i32_11 : i32 to vector<128x128xi32>
      %31 = arith.cmpi slt, %29, %30 : vector<128x128xi32>
      %cst = arith.constant 0.000000e+00 : f32
      %32 = vector.broadcast %cst : f32 to vector<128x128xf32>
      %33 = arith.select %31, %25, %32 : vector<128x128xi1>, vector<128x128xf32>
      %c0_12 = arith.constant 0 : index
      %c0_13 = arith.constant 0 : index
      %34 = vector.load %arg5[%c0_12, %c0_13] : memref<8x128xf32, #tpu.memory_space<vmem>>, vector<8x128xf32>
      %35 = vector.shape_cast %33 : vector<128x128xf32> to vector<16x8x128xf32>
      %cst_14 = arith.constant dense<0.000000e+00> : vector<8x128xf32>
      %36 = vector.multi_reduction <add>, %35, %cst_14 [0] : vector<16x8x128xf32> to vector<8x128xf32>
      %37 = arith.addf %34, %36 : vector<8x128xf32>
      %c0_15 = arith.constant 0 : index
      %c0_16 = arith.constant 0 : index
      %38 = vector.load %arg5[%c0_15, %c0_16] : memref<8x128xf32, #tpu.memory_space<vmem>>, vector<8x128xf32>
      tpu.vector_store %arg5[%c0_15, %c0_16], %37 {strides = array<i32>} : memref<8x128xf32, #tpu.memory_space<vmem>>, vector<8x128xf32>,
      %c1_i32_17 = arith.constant 1 : i32
    } else {
    }
    %c0_i32_4 = arith.constant 0 : i32
    %13 = arith.cmpi eq, %arg1, %c0_i32_4 : i32
    %14 = arith.extui %13 : i1 to i32
    %c0_i32_5 = arith.constant 0 : i32
    %15 = arith.cmpi ne, %14, %c0_i32_5 : i32
    scf.if %15 {
      %c0 = arith.constant 0 : index
      %c0_6 = arith.constant 0 : index
      %16 = vector.load %arg5[%c0, %c0_6] : memref<8x128xf32, #tpu.memory_space<vmem>>, vector<8x128xf32>
      %17 = vector.shape_cast %16 : vector<8x128xf32> to vector<1x8x128xf32>
      %cst = arith.constant dense<0.000000e+00> : vector<1xf32>
      %18 = vector.multi_reduction <add>, %17, %cst [1, 2] : vector<1x8x128xf32> to vector<1xf32>
      %19 = vector.shape_cast %18 : vector<1xf32> to vector<1x1x1xf32>
      %20 = vector.extract %19[0, 0, 0] : f32 from vector<1x1x1xf32>
      %c0_7 = arith.constant 0 : index
      %c0_8 = arith.constant 0 : index
      %21 = memref.load %arg4[%c0_7, %c0_8] : memref<1x1xf32, #tpu.memory_space<smem>>
      memref.store %20, %arg4[%c0_7, %c0_8] : memref<1x1xf32, #tpu.memory_space<smem>>
    } else {
    }
    return
  }
  func.func @transform_0(%arg0: i32, %arg1: i32) -> (i32, i32) {
    %c1_i32 = arith.constant 1 : i32
    %0 = arith.muli %arg0, %c1_i32 : i32
    %1 = arith.addi %0, %arg1 : i32
    %c0_i32 = arith.constant 0 : i32
    %2 = arith.minsi %1, %c0_i32 : i32
    %c0_i32_0 = arith.constant 0 : i32
    %c0_i32_1 = arith.constant 0 : i32
    return %2, %c0_i32_0 : i32, i32
  }
  func.func @transform_1(%arg0: i32, %arg1: i32) -> (i32, i32) {
    %c1_i32 = arith.constant 1 : i32
    %0 = arith.muli %arg0, %c1_i32 : i32
    %1 = arith.addi %0, %arg1 : i32
    %c0_i32 = arith.constant 0 : i32
    %2 = arith.minsi %1, %c0_i32 : i32
    %c0_i32_0 = arith.constant 0 : i32
    %c0_i32_1 = arith.constant 0 : i32
    return %2, %c0_i32_0 : i32, i32
  }
  func.func @transform_2(%arg0: i32, %arg1: i32) -> (i32, i32) {
    %c0_i32 = arith.constant 0 : i32
    %c0_i32_0 = arith.constant 0 : i32
    return %arg0, %c0_i32 : i32, i32
  }
}

</mosaic_0001>

<llo_original>
// kernel: tpu_custom_call.1
$region0: #{tpu_custom_call.1}
  #allocation0 [shape = 'u32[]', space=smem, size = 0x4, offset = 0x4, fixed_abs, tag = 'smem constant byte address 0x4 - core index']
  #allocation1 [shape = 'u32[144,128]{1,0:T(1,128)}', space=vmem, size = 0x12000, scoped, tag = 'internal scratch']
  #allocation2 [shape = 'f32[8,128]{1,0:T(8,128)}', space=vmem, size = 0x1000, scoped, tag = 'scratch operand']
  %s0 = inlined_call_operand.hbm [shape: f32[16,128], index: 0, kind: input, shape index: {}]
  %s1 = inlined_call_operand.hbm [shape: f32[16,128], index: 1, kind: input, shape index: {}]
  %s2 = inlined_call_operand.hbm [shape: f32[1,1], index: 2, kind: output, shape index: {}]
  %s3 = sld [smem:[#allocation0]]
  $region42: #{tpu_custom_call.1} parent=0
    _
  %s5 = ssub.s32 1, %s3
  %s6 = scalar_select 0, %s5, %s3
  $region1: #{tpu_custom_call.1} parent=0
    #allocation3 [shape = 'u8[65536]{0}', space=vmem, size = 0x10000, scoped, tag = 'input window, operand 0, single buffered']
    #allocation4 [shape = 's32[1]{0}', space=sflag, size = 0x4, scoped, tag = 'scoped memory for tpu_custom_call.1']
    #allocation5 [shape = 's32[1]{0}', space=sflag, size = 0x4, scoped, tag = 'scoped memory for tpu_custom_call.1']
    #allocation6 [shape = 'u8[65536]{0}', space=vmem, size = 0x10000, scoped, tag = 'input window, operand 1, single buffered']
    #allocation7 [shape = 's32[1]{0}', space=sflag, size = 0x4, scoped, tag = 'scoped memory for tpu_custom_call.1']
    #allocation8 [shape = 'u8[512]{0}', space=smem, size = 0x200, scoped, tag = 'output window, operand 0, single buffered']
    %7 = vsyncpa [#allocation4], 0
    %8 = vsyncpa [#allocation7], 0
    %9 = vsyncpa [#allocation5], 0
    // Predicated region
    $region2: #{tpu_custom_call.1} parent=1 // pred_check
      _
    $region3: #{tpu_custom_call.1} parent=1 // pred_check_branch
      %11 = sbr.rel (0) target = $region5
    $region4: #{tpu_custom_call.1} parent=1 // pred_region
      %s12 = sadd.s32 0, 0
      %p13 = scmp.lt.s32.totalorder %s12, 0
      %s14 = scalar_select %p13, %s12, 0
      %s15 = smul.u32 16, %s14
      %s16 = ssub.s32 2, %s15
      %s17 = smul.u32 128, %s16
      %s19 = ssub.s32 2048, %s17
      %20 = vsyncadd [#allocation4], %s19
      %p21 = scmp.ne.s32.totalorder 0, %s17
      %s22 = smul.addr %s15, 128
      %s23 = scalar_lea.hbm %s0, %s22
      %s24 = smul.u32 8, %s16
      %s25 = sshll.u32 [#allocation3], 4
      %s26 = int_to_ptr.vmem [resolvable:$true] %s25
      %s27 = sshll.u32 %s24, 4
      %31 = dma.hbm_to_vmem [thread:$0]  (%p21), %s23, %s27, %s26, [#allocation4], 128, 128, 8
    $region5: #{tpu_custom_call.1} parent=1 // pred_fallthru
      _
    // Predicated region
    $region6: #{tpu_custom_call.1} parent=1 // pred_check
      _
    $region7: #{tpu_custom_call.1} parent=1 // pred_check_branch
      %33 = sbr.rel (0) target = $region9
    $region8: #{tpu_custom_call.1} parent=1 // pred_region
      %s34 = sadd.s32 0, 0
      %p35 = scmp.lt.s32.totalorder %s34, 0
      %s36 = scalar_select %p35, %s34, 0
      %s37 = smul.u32 16, %s36
      %s38 = ssub.s32 2, %s37
      %s39 = smul.u32 128, %s38
      %s41 = ssub.s32 2048, %s39
      %42 = vsyncadd [#allocation7], %s41
      %p43 = scmp.ne.s32.totalorder 0, %s39
      %s44 = smul.addr %s37, 128
      %s45 = scalar_lea.hbm %s1, %s44
      %s46 = smul.u32 8, %s38
      %s47 = sshll.u32 [#allocation6], 4
      %s48 = int_to_ptr.vmem [resolvable:$true] %s47
      %s49 = sshll.u32 %s46, 4
      %53 = dma.hbm_to_vmem [thread:$0]  (%p43), %s45, %s49, %s48, [#allocation7], 128, 128, 8
    $region9: #{tpu_custom_call.1} parent=1 // pred_fallthru
      _
    // Predicated region
    $region10: #{tpu_custom_call.1} parent=1 // pred_check
      _
    $region11: #{tpu_custom_call.1} parent=1 // pred_check_branch
      %55 = sbr.rel (0) target = $region13
    $region12: #{tpu_custom_call.1} parent=1 // pred_region
      %56 = dma.done [#allocation4], 2048
    $region13: #{tpu_custom_call.1} parent=1 // pred_fallthru
      _
    // Predicated region
    $region14: #{tpu_custom_call.1} parent=1 // pred_check
      _
    $region15: #{tpu_custom_call.1} parent=1 // pred_check_branch
      %58 = sbr.rel (0) target = $region17
    $region16: #{tpu_custom_call.1} parent=1 // pred_region
      %59 = dma.done [#allocation7], 2048
    $region17: #{tpu_custom_call.1} parent=1 // pred_fallthru
      _
    %s60 = sadd.s32 0, 0
    %p61 = scmp.lt.s32.totalorder %s60, 0
    %s62 = scalar_select %p61, %s60, 0
    %s63 = smul.u32 16, %s62
    %s64 = ssub.s32 2, %s63
    %s65 = smul.u32 128, %s64
    %s66 = sadd.s32 0, 0
    %p67 = scmp.lt.s32.totalorder %s66, 0
    %s68 = scalar_select %p67, %s66, 0
    %s69 = smul.u32 16, %s68
    %s70 = ssub.s32 2, %s69
    %s71 = smul.u32 128, %s70
    %p72 = scmp.eq.s32.totalorder 0, 0
    // Predicated region
    $region18: #{tpu_custom_call.1} parent=1 // pred_check
      %p73 = pneg %p72
    $region19: #{tpu_custom_call.1} parent=1 // pred_check_branch
      %75 = sbr.rel (%p73) target = $region21
    $region20: #{tpu_custom_call.1} parent=1 // pred_region
      %76 = vst [vmem:[#allocation2] sm:$0xff] 0.0
    $region21: #{tpu_custom_call.1} parent=1 // pred_fallthru
      _
    %s77 = sadd.s32 0, 0
    %s78 = smul.u32 %s77, 128
    %s79 = sadd.s32 %s78, 128
    %p80 = scmp.le.s32.totalorder %s79, 16
    // Predicated region
    $region22: #{tpu_custom_call.1} parent=1 // pred_check
      %p81 = pneg %p80
    $region23: #{tpu_custom_call.1} parent=1 // pred_check_branch
      %83 = sbr.rel (%p81) target = $region25
    $region24: #{tpu_custom_call.1} parent=1 // pred_region
      %v84 = vld [vmem:[#allocation3] sm:$0xff]
      %v85 = vld [vmem:[#allocation3 + $0x8] sm:$0xff]
      %v86 = vld [vmem:[#allocation3 + $0x10] sm:$0xff]
      %v87 = vld [vmem:[#allocation3 + $0x18] sm:$0xff]
      %v88 = vld [vmem:[#allocation3 + $0x20] sm:$0xff]
      %v89 = vld [vmem:[#allocation3 + $0x28] sm:$0xff]
      %v90 = vld [vmem:[#allocation3 + $0x30] sm:$0xff]
      %v91 = vld [vmem:[#allocation3 + $0x38] sm:$0xff]
      %v92 = vld [vmem:[#allocation3 + $0x40] sm:$0xff]
      %v93 = vld [vmem:[#allocation3 + $0x48] sm:$0xff]
      %v94 = vld [vmem:[#allocation3 + $0x50] sm:$0xff]
      %v95 = vld [vmem:[#allocation3 + $0x58] sm:$0xff]
      %v96 = vld [vmem:[#allocation3 + $0x60] sm:$0xff]
      %v97 = vld [vmem:[#allocation3 + $0x68] sm:$0xff]
      %v98 = vld [vmem:[#allocation3 + $0x70] sm:$0xff]
      %v99 = vld [vmem:[#allocation3 + $0x78] sm:$0xff]
      %v100 = vld [vmem:[#allocation6] sm:$0xff]
      %v101 = vld [vmem:[#allocation6 + $0x8] sm:$0xff]
      %v102 = vld [vmem:[#allocation6 + $0x10] sm:$0xff]
      %v103 = vld [vmem:[#allocation6 + $0x18] sm:$0xff]
      %v104 = vld [vmem:[#allocation6 + $0x20] sm:$0xff]
      %v105 = vld [vmem:[#allocation6 + $0x28] sm:$0xff]
      %v106 = vld [vmem:[#allocation6 + $0x30] sm:$0xff]
      %v107 = vld [vmem:[#allocation6 + $0x38] sm:$0xff]
      %v108 = vld [vmem:[#allocation6 + $0x40] sm:$0xff]
      %v109 = vld [vmem:[#allocation6 + $0x48] sm:$0xff]
      %v110 = vld [vmem:[#allocation6 + $0x50] sm:$0xff]
      %v111 = vld [vmem:[#allocation6 + $0x58] sm:$0xff]
      %v112 = vld [vmem:[#allocation6 + $0x60] sm:$0xff]
      %v113 = vld [vmem:[#allocation6 + $0x68] sm:$0xff]
      %v114 = vld [vmem:[#allocation6 + $0x70] sm:$0xff]
      %v115 = vld [vmem:[#allocation6 + $0x78] sm:$0xff]
      %v116 = vsub.f32 %v84, %v100
      %v117 = vsub.f32 %v85, %v101
      %v118 = vsub.f32 %v86, %v102
      %v119 = vsub.f32 %v87, %v103
      %v120 = vsub.f32 %v88, %v104
      %v121 = vsub.f32 %v89, %v105
      %v122 = vsub.f32 %v90, %v106
      %v123 = vsub.f32 %v91, %v107
      %v124 = vsub.f32 %v92, %v108
      %v125 = vsub.f32 %v93, %v109
      %v126 = vsub.f32 %v94, %v110
      %v127 = vsub.f32 %v95, %v111
      %v128 = vsub.f32 %v96, %v112
      %v129 = vsub.f32 %v97, %v113
      %v130 = vsub.f32 %v98, %v114
      %v131 = vsub.f32 %v99, %v115
      %v132 = vmul.f32 %v116, %v116
      %v133 = vmul.f32 %v117, %v117
      %v134 = vmul.f32 %v118, %v118
      %v135 = vmul.f32 %v119, %v119
      %v136 = vmul.f32 %v120, %v120
      %v137 = vmul.f32 %v121, %v121
      %v138 = vmul.f32 %v122, %v122
      %v139 = vmul.f32 %v123, %v123
      %v140 = vmul.f32 %v124, %v124
      %v141 = vmul.f32 %v125, %v125
      %v142 = vmul.f32 %v126, %v126
      %v143 = vmul.f32 %v127, %v127
      %v144 = vmul.f32 %v128, %v128
      %v145 = vmul.f32 %v129, %v129
      %v146 = vmul.f32 %v130, %v130
      %v147 = vmul.f32 %v131, %v131
      %v148 = vld [vmem:[#allocation2] sm:$0xff]
      %v149 = vadd.f32 %v132, %v133
      %v150 = vadd.f32 %v149, %v134
      %v151 = vadd.f32 %v150, %v135
      %v152 = vadd.f32 %v151, %v136
      %v153 = vadd.f32 %v152, %v137
      %v154 = vadd.f32 %v153, %v138
      %v155 = vadd.f32 %v154, %v139
      %v156 = vadd.f32 %v155, %v140
      %v157 = vadd.f32 %v156, %v141
      %v158 = vadd.f32 %v157, %v142
      %v159 = vadd.f32 %v158, %v143
      %v160 = vadd.f32 %v159, %v144
      %v161 = vadd.f32 %v160, %v145
      %v162 = vadd.f32 %v161, %v146
      %v163 = vadd.f32 %v162, %v147
      %v164 = vadd.f32 %v148, %v163
      %165 = vst [vmem:[#allocation2] sm:$0xff] %v164
    $region25: #{tpu_custom_call.1} parent=1 // pred_fallthru
      _
    %p166 = scmp.gt.s32.totalorder %s79, 16
    // Predicated region
    $region26: #{tpu_custom_call.1} parent=1 // pred_check
      %p167 = pneg %p166
    $region27: #{tpu_custom_call.1} parent=1 // pred_check_branch
      %169 = sbr.rel (%p167) target = $region29
    $region28: #{tpu_custom_call.1} parent=1 // pred_region
      %v170 = vld [vmem:[#allocation3] sm:$0xff]
      %v171 = vld [vmem:[#allocation3 + $0x8] sm:$0xff]
      %v172 = vld [vmem:[#allocation3 + $0x10] sm:$0xff]
      %v173 = vld [vmem:[#allocation3 + $0x18] sm:$0xff]
      %v174 = vld [vmem:[#allocation3 + $0x20] sm:$0xff]
      %v175 = vld [vmem:[#allocation3 + $0x28] sm:$0xff]
      %v176 = vld [vmem:[#allocation3 + $0x30] sm:$0xff]
      %v177 = vld [vmem:[#allocation3 + $0x38] sm:$0xff]
      %v178 = vld [vmem:[#allocation3 + $0x40] sm:$0xff]
      %v179 = vld [vmem:[#allocation3 + $0x48] sm:$0xff]
      %v180 = vld [vmem:[#allocation3 + $0x50] sm:$0xff]
      %v181 = vld [vmem:[#allocation3 + $0x58] sm:$0xff]
      %v182 = vld [vmem:[#allocation3 + $0x60] sm:$0xff]
      %v183 = vld [vmem:[#allocation3 + $0x68] sm:$0xff]
      %v184 = vld [vmem:[#allocation3 + $0x70] sm:$0xff]
      %v185 = vld [vmem:[#allocation3 + $0x78] sm:$0xff]
      %v186 = vld [vmem:[#allocation6] sm:$0xff]
      %v187 = vld [vmem:[#allocation6 + $0x8] sm:$0xff]
      %v188 = vld [vmem:[#allocation6 + $0x10] sm:$0xff]
      %v189 = vld [vmem:[#allocation6 + $0x18] sm:$0xff]
      %v190 = vld [vmem:[#allocation6 + $0x20] sm:$0xff]
      %v191 = vld [vmem:[#allocation6 + $0x28] sm:$0xff]
      %v192 = vld [vmem:[#allocation6 + $0x30] sm:$0xff]
      %v193 = vld [vmem:[#allocation6 + $0x38] sm:$0xff]
      %v194 = vld [vmem:[#allocation6 + $0x40] sm:$0xff]
      %v195 = vld [vmem:[#allocation6 + $0x48] sm:$0xff]
      %v196 = vld [vmem:[#allocation6 + $0x50] sm:$0xff]
      %v197 = vld [vmem:[#allocation6 + $0x58] sm:$0xff]
      %v198 = vld [vmem:[#allocation6 + $0x60] sm:$0xff]
      %v199 = vld [vmem:[#allocation6 + $0x68] sm:$0xff]
      %v200 = vld [vmem:[#allocation6 + $0x70] sm:$0xff]
      %v201 = vld [vmem:[#allocation6 + $0x78] sm:$0xff]
      %v202 = vsub.f32 %v170, %v186
      %v203 = vsub.f32 %v171, %v187
      %v204 = vsub.f32 %v172, %v188
      %v205 = vsub.f32 %v173, %v189
      %v206 = vsub.f32 %v174, %v190
      %v207 = vsub.f32 %v175, %v191
      %v208 = vsub.f32 %v176, %v192
      %v209 = vsub.f32 %v177, %v193
      %v210 = vsub.f32 %v178, %v194
      %v211 = vsub.f32 %v179, %v195
      %v212 = vsub.f32 %v180, %v196
      %v213 = vsub.f32 %v181, %v197
      %v214 = vsub.f32 %v182, %v198
      %v215 = vsub.f32 %v183, %v199
      %v216 = vsub.f32 %v184, %v200
      %v217 = vsub.f32 %v185, %v201
      %v218 = vmul.f32 %v202, %v202
      %v219 = vmul.f32 %v203, %v203
      %v220 = vmul.f32 %v204, %v204
      %v221 = vmul.f32 %v205, %v205
      %v222 = vmul.f32 %v206, %v206
      %v223 = vmul.f32 %v207, %v207
      %v224 = vmul.f32 %v208, %v208
      %v225 = vmul.f32 %v209, %v209
      %v226 = vmul.f32 %v210, %v210
      %v227 = vmul.f32 %v211, %v211
      %v228 = vmul.f32 %v212, %v212
      %v229 = vmul.f32 %v213, %v213
      %v230 = vmul.f32 %v214, %v214
      %v231 = vmul.f32 %v215, %v215
      %v232 = vmul.f32 %v216, %v216
      %v233 = vmul.f32 %v217, %v217
      %s234 = sadd.s32 %s78, 0
      %v235 = vlaneseq
      %v236 = vshrl.u32 %v235, 7
      %v237 = vadd.s32 %v236, 8
      %v238 = vadd.s32 %v236, 16
      %v239 = vadd.s32 %v236, 24
      %v240 = vadd.s32 %v236, 32
      %v241 = vadd.s32 %v236, 40
      %v242 = vadd.s32 %v236, 48
      %v243 = vadd.s32 %v236, 56
      %v244 = vadd.s32 %v236, 64
      %v245 = vadd.s32 %v236, 72
      %v246 = vadd.s32 %v236, 80
      %v247 = vadd.s32 %v236, 88
      %v248 = vadd.s32 %v236, 96
      %v249 = vadd.s32 %v236, 104
      %v250 = vadd.s32 %v236, 112
      %v251 = vadd.s32 %v236, 120
      %v252 = vstv %s234
      %v253 = vadd.s32 %v252, %v236
      %v254 = vadd.s32 %v252, %v237
      %v255 = vadd.s32 %v252, %v238
      %v256 = vadd.s32 %v252, %v239
      %v257 = vadd.s32 %v252, %v240
      %v258 = vadd.s32 %v252, %v241
      %v259 = vadd.s32 %v252, %v242
      %v260 = vadd.s32 %v252, %v243
      %v261 = vadd.s32 %v252, %v244
      %v262 = vadd.s32 %v252, %v245
      %v263 = vadd.s32 %v252, %v246
      %v264 = vadd.s32 %v252, %v247
      %v265 = vadd.s32 %v252, %v248
      %v266 = vadd.s32 %v252, %v249
      %v267 = vadd.s32 %v252, %v250
      %v268 = vadd.s32 %v252, %v251
      %vm269 = vcmp.lt.s32.totalorder %v253, 16
      %vm270 = vcmp.lt.s32.totalorder %v254, 16
      %vm271 = vcmp.lt.s32.totalorder %v255, 16
      %vm272 = vcmp.lt.s32.totalorder %v256, 16
      %vm273 = vcmp.lt.s32.totalorder %v257, 16
      %vm274 = vcmp.lt.s32.totalorder %v258, 16
      %vm275 = vcmp.lt.s32.totalorder %v259, 16
      %vm276 = vcmp.lt.s32.totalorder %v260, 16
      %vm277 = vcmp.lt.s32.totalorder %v261, 16
      %vm278 = vcmp.lt.s32.totalorder %v262, 16
      %vm279 = vcmp.lt.s32.totalorder %v263, 16
      %vm280 = vcmp.lt.s32.totalorder %v264, 16
      %vm281 = vcmp.lt.s32.totalorder %v265, 16
      %vm282 = vcmp.lt.s32.totalorder %v266, 16
      %vm283 = vcmp.lt.s32.totalorder %v267, 16
      %vm284 = vcmp.lt.s32.totalorder %v268, 16
      %v285 = vsel %vm269, %v218, 0.0
      %v286 = vsel %vm270, %v219, 0.0
      %v287 = vsel %vm271, %v220, 0.0
      %v288 = vsel %vm272, %v221, 0.0
      %v289 = vsel %vm273, %v222, 0.0
      %v290 = vsel %vm274, %v223, 0.0
      %v291 = vsel %vm275, %v224, 0.0
      %v292 = vsel %vm276, %v225, 0.0
      %v293 = vsel %vm277, %v226, 0.0
      %v294 = vsel %vm278, %v227, 0.0
      %v295 = vsel %vm279, %v228, 0.0
      %v296 = vsel %vm280, %v229, 0.0
      %v297 = vsel %vm281, %v230, 0.0
      %v298 = vsel %vm282, %v231, 0.0
      %v299 = vsel %vm283, %v232, 0.0
      %v300 = vsel %vm284, %v233, 0.0
      %v301 = vld [vmem:[#allocation2] sm:$0xff]
      %v302 = vadd.f32 %v285, %v286
      %v303 = vadd.f32 %v302, %v287
      %v304 = vadd.f32 %v303, %v288
      %v305 = vadd.f32 %v304, %v289
      %v306 = vadd.f32 %v305, %v290
      %v307 = vadd.f32 %v306, %v291
      %v308 = vadd.f32 %v307, %v292
      %v309 = vadd.f32 %v308, %v293
      %v310 = vadd.f32 %v309, %v294
      %v311 = vadd.f32 %v310, %v295
      %v312 = vadd.f32 %v311, %v296
      %v313 = vadd.f32 %v312, %v297
      %v314 = vadd.f32 %v313, %v298
      %v315 = vadd.f32 %v314, %v299
      %v316 = vadd.f32 %v315, %v300
      %v317 = vadd.f32 %v301, %v316
      %318 = vst [vmem:[#allocation2] sm:$0xff] %v317
    $region29: #{tpu_custom_call.1} parent=1 // pred_fallthru
      _
    // Predicated region
    $region30: #{tpu_custom_call.1} parent=1 // pred_check
      %p319 = pneg %p72
    $region31: #{tpu_custom_call.1} parent=1 // pred_check_branch
      %321 = sbr.rel (%p319) target = $region33
    $region32: #{tpu_custom_call.1} parent=1 // pred_region
      %v322 = vld [vmem:[#allocation2] sm:$0xff]
      %323 = vadd.xlane.f32.xlu0 %v322
      %v324 = vpop.xlane.xlu0 %323
      %v325 = vrot.slane %v324, 4
      %v326 = vadd.f32 %v324, %v325
      %v327 = vrot.slane %v326, 2
      %v328 = vadd.f32 %v326, %v327
      %v329 = vrot.slane %v328, 1
      %v330 = vadd.f32 %v328, %v329
      %s331 = vtos %v330
      %s332 = scalar_lea.smem [#allocation8], 0
      %333 = sst [smem:[%s332]] %s331
    $region33: #{tpu_custom_call.1} parent=1 // pred_fallthru
      _
    // Predicated region
    $region34: #{tpu_custom_call.1} parent=1 // pred_check
      _
    $region35: #{tpu_custom_call.1} parent=1 // pred_check_branch
      %335 = sbr.rel (0) target = $region37
    $region36: #{tpu_custom_call.1} parent=1 // pred_region
      %s337 = ssub.s32 16, 16
      %338 = vsyncadd [#allocation5], %s337
      %341 = dma.smem_to_hbm [#allocation8], 16, %s2, [#allocation5]
    $region37: #{tpu_custom_call.1} parent=1 // pred_fallthru
      _
    // Predicated region
    $region38: #{tpu_custom_call.1} parent=1 // pred_check
      _
    $region39: #{tpu_custom_call.1} parent=1 // pred_check_branch
      %343 = sbr.rel (0) target = $region41
    $region40: #{tpu_custom_call.1} parent=1 // pred_region
      %344 = dma.done [#allocation5], 16
    $region41: #{tpu_custom_call.1} parent=1 // pred_fallthru
      _
    %345 = sfence
    %346 = vsyncpa [#allocation4], 1
    %347 = vsyncpa [#allocation7], 1
    %348 = vsyncpa [#allocation5], 1

</llo_original>
